<compile_context>
chip_gen: v6e
topology: v6e:2x2x1
jax: 0.10.0
libtpu: 0.0.40
codegen_flags: <defaults>
</compile_context>

<pallas_src>
import functools

import jax
import jax.numpy as jnp
from jax import lax
from jax.experimental import pallas as pl
from jax.experimental.pallas import tpu as pltpu


def bn_relu_kernel(x_ref, gb_ref, o_ref, *, eps):
    """Fused train-mode BatchNorm2d + ReLU in channel-major layout.

    x_ref:  (C, M)  C channels on sublanes, M = N*H*W spatial on lanes
    gb_ref: (C, 2)  column 0 = gamma, column 1 = beta
    o_ref:  (C, M)
    """
    x = x_ref[...].astype(jnp.float32)            # single read of x  (C, M)
    m = x.shape[1]                                 # static reduction size
    inv_m = jnp.float32(1.0 / m)

    # Per-channel batch statistics (biased variance = BN training mode).
    # Two-pass variance: numerically stable vs. E[x^2]-mean^2.
    mean = jnp.sum(x, axis=1, keepdims=True) * inv_m       # (C,1) XLU lane reduce
    xc = x - mean                                           # centered (reused below)
    var = jnp.sum(xc * xc, axis=1, keepdims=True) * inv_m   # (C,1)

    inv_std = lax.rsqrt(var + jnp.float32(eps))             # EUP rsqrt
    scale = gb_ref[:, 0:1].astype(jnp.float32) * inv_std    # gamma * inv_std (C,1)
    beta = gb_ref[:, 1:2].astype(jnp.float32)               # (C,1)

    # y = (x - mean) * (gamma/std) + beta, then ReLU. Reuses xc (no re-read of x).
    o_ref[...] = jnp.maximum(xc * scale + beta, 0.0).astype(o_ref.dtype)


@functools.partial(jax.jit, static_argnames=("eps",))
def batchnorm_relu(x_nchw, gamma, beta, eps=1e-5):
    """Wrapper: NCHW -> (C, N*H*W) channel-major slab -> Pallas kernel -> NCHW."""
    n, c, h, w = x_nchw.shape
    m = n * h * w

    if n == 1:
        x2d = x_nchw.reshape(c, m)                 # free contiguous reshape
    else:
        # TODO(synk): n>1 path adds two XLA transposes around this tiny kernel.
        x2d = jnp.transpose(x_nchw, (1, 0, 2, 3)).reshape(c, m)

    gb = jnp.stack(
        [gamma.astype(jnp.float32), beta.astype(jnp.float32)], axis=1
    )                                              # (C, 2) single small operand

    cost = pl.CostEstimate(
        flops=7 * c * m,               # sum, center, square, sum, mul, add, relu
        transcendentals=c,             # rsqrt per channel
        bytes_accessed=2 * c * m * x_nchw.dtype.itemsize + gb.size * 4,
    )

    out2d = pl.pallas_call(
        functools.partial(bn_relu_kernel, eps=eps),
        out_shape=jax.ShapeDtypeStruct((c, m), x_nchw.dtype),
        in_specs=[
            pl.BlockSpec(memory_space=pltpu.MemorySpace.VMEM),
            pl.BlockSpec(memory_space=pltpu.MemorySpace.VMEM),
        ],
        out_specs=pl.BlockSpec(memory_space=pltpu.MemorySpace.VMEM),
        input_output_aliases={0: 0},   # reuse x2d's HBM buffer for the output
        cost_estimate=cost,
    )(x2d, gb)

    if n == 1:
        return out2d.reshape(n, c, h, w)
    return jnp.transpose(out2d.reshape(c, n, h, w), (1, 0, 2, 3))


def reference_bn_relu(x_nchw, gamma, beta, eps=1e-5):
    """Pure-JAX reference (train-mode BN + ReLU)."""
    mean = jnp.mean(x_nchw, axis=(0, 2, 3), keepdims=True)
    var = jnp.mean((x_nchw - mean) ** 2, axis=(0, 2, 3), keepdims=True)
    y = (x_nchw - mean) / jnp.sqrt(var + eps)
    y = y * gamma.reshape(1, -1, 1, 1) + beta.reshape(1, -1, 1, 1)
    return jnp.maximum(y, 0.0)


if __name__ == "__main__":
    key = jax.random.PRNGKey(0)
    kx, kg, kb = jax.random.split(key, 3)

    # Input matching the module: NCHW [1, 352, 7, 7]
    x = jax.random.normal(kx, (1, 352, 7, 7), dtype=jnp.float32)

    # BatchNorm2d affine parameters (shape (352,)); randomized to exercise the
    # affine path (PyTorch init would be weight=1, bias=0).
    gamma = 1.0 + 0.1 * jax.random.normal(kg, (352,), dtype=jnp.float32)
    beta = 0.1 * jax.random.normal(kb, (352,), dtype=jnp.float32)

    out = batchnorm_relu(x, gamma, beta, eps=1e-5)
    out = jax.block_until_ready(out)

    ref = reference_bn_relu(x, gamma, beta, eps=1e-5)
    assert out.shape == (1, 352, 7, 7)
    assert jnp.allclose(out, ref, atol=1e-4, rtol=1e-4)

    print("KERNEL_OK")
</pallas_src>

<mosaic_0001>
module attributes {stable_mosaic.version = 11 : i64} {
  func.func @bn_relu_kernel(%arg0: memref<352x49xf32, #tpu.memory_space<vmem>>, %arg1: memref<352x2xf32, #tpu.memory_space<vmem>>, %arg2: memref<352x49xf32, #tpu.memory_space<vmem>>) attributes {dimension_semantics = [], scalar_prefetch = 0 : i64, scratch_operands = 0 : i64, tpu.core_type = #tpu.core_type<tc>} {
    %c0 = arith.constant 0 : index
    %c0_0 = arith.constant 0 : index
    %0 = vector.load %arg0[%c0, %c0_0] : memref<352x49xf32, #tpu.memory_space<vmem>>, vector<352x49xf32>
    %cst = arith.constant dense<0.000000e+00> : vector<352xf32>
    %1 = vector.multi_reduction <add>, %0, %cst [1] : vector<352x49xf32> to vector<352xf32>
    %2 = vector.shape_cast %1 : vector<352xf32> to vector<352x1xf32>
    %cst_1 = arith.constant 0.0204081628 : f32
    %3 = vector.broadcast %cst_1 : f32 to vector<352x1xf32>
    %4 = arith.mulf %2, %3 : vector<352x1xf32>
    %5 = vector.broadcast %4 : vector<352x1xf32> to vector<352x49xf32>
    %6 = arith.subf %0, %5 : vector<352x49xf32>
    %7 = arith.mulf %6, %6 : vector<352x49xf32>
    %cst_2 = arith.constant dense<0.000000e+00> : vector<352xf32>
    %8 = vector.multi_reduction <add>, %7, %cst_2 [1] : vector<352x49xf32> to vector<352xf32>
    %9 = vector.shape_cast %8 : vector<352xf32> to vector<352x1xf32>
    %cst_3 = arith.constant 0.0204081628 : f32
    %10 = vector.broadcast %cst_3 : f32 to vector<352x1xf32>
    %11 = arith.mulf %9, %10 : vector<352x1xf32>
    %cst_4 = arith.constant 9.99999974E-6 : f32
    %12 = vector.broadcast %cst_4 : f32 to vector<352x1xf32>
    %13 = arith.addf %11, %12 : vector<352x1xf32>
    %14 = math.rsqrt %13 : vector<352x1xf32>
    %c0_5 = arith.constant 0 : index
    %c0_6 = arith.constant 0 : index
    %15 = vector.load %arg1[%c0_5, %c0_6] : memref<352x2xf32, #tpu.memory_space<vmem>>, vector<352x1xf32>
    %16 = arith.mulf %15, %14 : vector<352x1xf32>
    %c0_7 = arith.constant 0 : index
    %c1 = arith.constant 1 : index
    %17 = vector.load %arg1[%c0_7, %c1] : memref<352x2xf32, #tpu.memory_space<vmem>>, vector<352x1xf32>
    %18 = vector.broadcast %16 : vector<352x1xf32> to vector<352x49xf32>
    %19 = arith.mulf %6, %18 : vector<352x49xf32>
    %20 = vector.broadcast %17 : vector<352x1xf32> to vector<352x49xf32>
    %21 = arith.addf %19, %20 : vector<352x49xf32>
    %cst_8 = arith.constant 0.000000e+00 : f32
    %22 = vector.broadcast %cst_8 : f32 to vector<352x49xf32>
    %23 = arith.maximumf %21, %22 : vector<352x49xf32>
    %c0_9 = arith.constant 0 : index
    %c0_10 = arith.constant 0 : index
    %24 = vector.load %arg2[%c0_9, %c0_10] : memref<352x49xf32, #tpu.memory_space<vmem>>, vector<352x49xf32>
    tpu.vector_store %arg2[%c0_9, %c0_10], %23 {strides = array<i32>} : memref<352x49xf32, #tpu.memory_space<vmem>>, vector<352x49xf32>,
    return
  }
}

</mosaic_0001>

<llo_original>
// kernel: batchnorm_relu.1
$region0: #{batchnorm_relu.1}
  #allocation0 [shape = 'u32[]', space=smem, size = 0x4, offset = 0x4, fixed_abs, tag = 'smem constant byte address 0x4 - core index']
  #allocation1 [shape = 'u32[144,128]{1,0:T(1,128)}', space=vmem, size = 0x12000, scoped, tag = 'internal scratch']
  %s0 = inlined_call_operand.vmem [shape: f32[352,49], index: 0, kind: input, shape index: {}, may-alias: {0,2}]
  %s1 = inlined_call_operand.vmem [shape: f32[352,2], index: 1, kind: input, shape index: {}]
  %s2 = inlined_call_operand.vmem [shape: f32[352,49], index: 2, kind: output, shape index: {}, may-alias: {0,2}]
  %s3 = sld [smem:[#allocation0]]
  $region18: #{batchnorm_relu.1} parent=0
    _
  %s5 = ssub.s32 1, %s3
  %s6 = scalar_select 0, %s5, %s3
  // Predicated region
  $region2: #{batchnorm_relu.1} parent=0 // pred_check
    _
  $region3: #{batchnorm_relu.1} parent=0 // pred_check_branch
    %8 = sbr.rel (0) target = $region5
  $region4: #{batchnorm_relu.1} parent=0 // pred_region
    _
  $region5: #{batchnorm_relu.1} parent=0 // pred_fallthru
    _
  // Predicated region
  $region6: #{batchnorm_relu.1} parent=0 // pred_check
    _
  $region7: #{batchnorm_relu.1} parent=0 // pred_check_branch
    %10 = sbr.rel (0) target = $region9
  $region8: #{batchnorm_relu.1} parent=0 // pred_region
    _
  $region9: #{batchnorm_relu.1} parent=0 // pred_fallthru
    _
  %v11 = vld [vmem:[%s0] sm:$0xff]
  %v12 = vld [vmem:[%s0 + $0x8] sm:$0xff]
  %v13 = vld [vmem:[%s0 + $0x10] sm:$0xff]
  %v14 = vld [vmem:[%s0 + $0x18] sm:$0xff]
  %v15 = vld [vmem:[%s0 + $0x20] sm:$0xff]
  %v16 = vld [vmem:[%s0 + $0x28] sm:$0xff]
  %v17 = vld [vmem:[%s0 + $0x30] sm:$0xff]
  %v18 = vld [vmem:[%s0 + $0x38] sm:$0xff]
  %v19 = vld [vmem:[%s0 + $0x40] sm:$0xff]
  %v20 = vld [vmem:[%s0 + $0x48] sm:$0xff]
  %v21 = vld [vmem:[%s0 + $0x50] sm:$0xff]
  %v22 = vld [vmem:[%s0 + $0x58] sm:$0xff]
  %v23 = vld [vmem:[%s0 + $0x60] sm:$0xff]
  %v24 = vld [vmem:[%s0 + $0x68] sm:$0xff]
  %v25 = vld [vmem:[%s0 + $0x70] sm:$0xff]
  %v26 = vld [vmem:[%s0 + $0x78] sm:$0xff]
  %v27 = vld [vmem:[%s0 + $0x80] sm:$0xff]
  %v28 = vld [vmem:[%s0 + $0x88] sm:$0xff]
  %v29 = vld [vmem:[%s0 + $0x90] sm:$0xff]
  %v30 = vld [vmem:[%s0 + $0x98] sm:$0xff]
  %v31 = vld [vmem:[%s0 + $0xa0] sm:$0xff]
  %v32 = vld [vmem:[%s0 + $0xa8] sm:$0xff]
  %v33 = vld [vmem:[%s0 + $0xb0] sm:$0xff]
  %v34 = vld [vmem:[%s0 + $0xb8] sm:$0xff]
  %v35 = vld [vmem:[%s0 + $0xc0] sm:$0xff]
  %v36 = vld [vmem:[%s0 + $0xc8] sm:$0xff]
  %v37 = vld [vmem:[%s0 + $0xd0] sm:$0xff]
  %v38 = vld [vmem:[%s0 + $0xd8] sm:$0xff]
  %v39 = vld [vmem:[%s0 + $0xe0] sm:$0xff]
  %v40 = vld [vmem:[%s0 + $0xe8] sm:$0xff]
  %v41 = vld [vmem:[%s0 + $0xf0] sm:$0xff]
  %v42 = vld [vmem:[%s0 + $0xf8] sm:$0xff]
  %v43 = vld [vmem:[%s0 + $0x100] sm:$0xff]
  %v44 = vld [vmem:[%s0 + $0x108] sm:$0xff]
  %v45 = vld [vmem:[%s0 + $0x110] sm:$0xff]
  %v46 = vld [vmem:[%s0 + $0x118] sm:$0xff]
  %v47 = vld [vmem:[%s0 + $0x120] sm:$0xff]
  %v48 = vld [vmem:[%s0 + $0x128] sm:$0xff]
  %v49 = vld [vmem:[%s0 + $0x130] sm:$0xff]
  %v50 = vld [vmem:[%s0 + $0x138] sm:$0xff]
  %v51 = vld [vmem:[%s0 + $0x140] sm:$0xff]
  %v52 = vld [vmem:[%s0 + $0x148] sm:$0xff]
  %v53 = vld [vmem:[%s0 + $0x150] sm:$0xff]
  %v54 = vld [vmem:[%s0 + $0x158] sm:$0xff]
  %vm55 = vcmask 400384
  %v56 = vsel %vm55, %v11, 0.0
  %57 = vadd.xlane.f32.xlu0 %v56
  %v58 = vpop.xlane.xlu0 %57
  %v59 = vsel %vm55, %v12, 0.0
  %60 = vadd.xlane.f32.xlu0 %v59
  %v61 = vpop.xlane.xlu0 %60
  %v62 = vsel %vm55, %v13, 0.0
  %63 = vadd.xlane.f32.xlu0 %v62
  %v64 = vpop.xlane.xlu0 %63
  %v65 = vsel %vm55, %v14, 0.0
  %66 = vadd.xlane.f32.xlu0 %v65
  %v67 = vpop.xlane.xlu0 %66
  %v68 = vsel %vm55, %v15, 0.0
  %69 = vadd.xlane.f32.xlu0 %v68
  %v70 = vpop.xlane.xlu0 %69
  %v71 = vsel %vm55, %v16, 0.0
  %72 = vadd.xlane.f32.xlu0 %v71
  %v73 = vpop.xlane.xlu0 %72
  %v74 = vsel %vm55, %v17, 0.0
  %75 = vadd.xlane.f32.xlu0 %v74
  %v76 = vpop.xlane.xlu0 %75
  %v77 = vsel %vm55, %v18, 0.0
  %78 = vadd.xlane.f32.xlu0 %v77
  %v79 = vpop.xlane.xlu0 %78
  %v80 = vsel %vm55, %v19, 0.0
  %81 = vadd.xlane.f32.xlu0 %v80
  %v82 = vpop.xlane.xlu0 %81
  %v83 = vsel %vm55, %v20, 0.0
  %84 = vadd.xlane.f32.xlu0 %v83
  %v85 = vpop.xlane.xlu0 %84
  %v86 = vsel %vm55, %v21, 0.0
  %87 = vadd.xlane.f32.xlu0 %v86
  %v88 = vpop.xlane.xlu0 %87
  %v89 = vsel %vm55, %v22, 0.0
  %90 = vadd.xlane.f32.xlu0 %v89
  %v91 = vpop.xlane.xlu0 %90
  %v92 = vsel %vm55, %v23, 0.0
  %93 = vadd.xlane.f32.xlu0 %v92
  %v94 = vpop.xlane.xlu0 %93
  %v95 = vsel %vm55, %v24, 0.0
  %96 = vadd.xlane.f32.xlu0 %v95
  %v97 = vpop.xlane.xlu0 %96
  %v98 = vsel %vm55, %v25, 0.0
  %99 = vadd.xlane.f32.xlu0 %v98
  %v100 = vpop.xlane.xlu0 %99
  %v101 = vsel %vm55, %v26, 0.0
  %102 = vadd.xlane.f32.xlu0 %v101
  %v103 = vpop.xlane.xlu0 %102
  %v104 = vsel %vm55, %v27, 0.0
  %105 = vadd.xlane.f32.xlu0 %v104
  %v106 = vpop.xlane.xlu0 %105
  %v107 = vsel %vm55, %v28, 0.0
  %108 = vadd.xlane.f32.xlu0 %v107
  %v109 = vpop.xlane.xlu0 %108
  %v110 = vsel %vm55, %v29, 0.0
  %111 = vadd.xlane.f32.xlu0 %v110
  %v112 = vpop.xlane.xlu0 %111
  %v113 = vsel %vm55, %v30, 0.0
  %114 = vadd.xlane.f32.xlu0 %v113
  %v115 = vpop.xlane.xlu0 %114
  %v116 = vsel %vm55, %v31, 0.0
  %117 = vadd.xlane.f32.xlu0 %v116
  %v118 = vpop.xlane.xlu0 %117
  %v119 = vsel %vm55, %v32, 0.0
  %120 = vadd.xlane.f32.xlu0 %v119
  %v121 = vpop.xlane.xlu0 %120
  %v122 = vsel %vm55, %v33, 0.0
  %123 = vadd.xlane.f32.xlu0 %v122
  %v124 = vpop.xlane.xlu0 %123
  %v125 = vsel %vm55, %v34, 0.0
  %126 = vadd.xlane.f32.xlu0 %v125
  %v127 = vpop.xlane.xlu0 %126
  %v128 = vsel %vm55, %v35, 0.0
  %129 = vadd.xlane.f32.xlu0 %v128
  %v130 = vpop.xlane.xlu0 %129
  %v131 = vsel %vm55, %v36, 0.0
  %132 = vadd.xlane.f32.xlu0 %v131
  %v133 = vpop.xlane.xlu0 %132
  %v134 = vsel %vm55, %v37, 0.0
  %135 = vadd.xlane.f32.xlu0 %v134
  %v136 = vpop.xlane.xlu0 %135
  %v137 = vsel %vm55, %v38, 0.0
  %138 = vadd.xlane.f32.xlu0 %v137
  %v139 = vpop.xlane.xlu0 %138
  %v140 = vsel %vm55, %v39, 0.0
  %141 = vadd.xlane.f32.xlu0 %v140
  %v142 = vpop.xlane.xlu0 %141
  %v143 = vsel %vm55, %v40, 0.0
  %144 = vadd.xlane.f32.xlu0 %v143
  %v145 = vpop.xlane.xlu0 %144
  %v146 = vsel %vm55, %v41, 0.0
  %147 = vadd.xlane.f32.xlu0 %v146
  %v148 = vpop.xlane.xlu0 %147
  %v149 = vsel %vm55, %v42, 0.0
  %150 = vadd.xlane.f32.xlu0 %v149
  %v151 = vpop.xlane.xlu0 %150
  %v152 = vsel %vm55, %v43, 0.0
  %153 = vadd.xlane.f32.xlu0 %v152
  %v154 = vpop.xlane.xlu0 %153
  %v155 = vsel %vm55, %v44, 0.0
  %156 = vadd.xlane.f32.xlu0 %v155
  %v157 = vpop.xlane.xlu0 %156
  %v158 = vsel %vm55, %v45, 0.0
  %159 = vadd.xlane.f32.xlu0 %v158
  %v160 = vpop.xlane.xlu0 %159
  %v161 = vsel %vm55, %v46, 0.0
  %162 = vadd.xlane.f32.xlu0 %v161
  %v163 = vpop.xlane.xlu0 %162
  %v164 = vsel %vm55, %v47, 0.0
  %165 = vadd.xlane.f32.xlu0 %v164
  %v166 = vpop.xlane.xlu0 %165
  %v167 = vsel %vm55, %v48, 0.0
  %168 = vadd.xlane.f32.xlu0 %v167
  %v169 = vpop.xlane.xlu0 %168
  %v170 = vsel %vm55, %v49, 0.0
  %171 = vadd.xlane.f32.xlu0 %v170
  %v172 = vpop.xlane.xlu0 %171
  %v173 = vsel %vm55, %v50, 0.0
  %174 = vadd.xlane.f32.xlu0 %v173
  %v175 = vpop.xlane.xlu0 %174
  %v176 = vsel %vm55, %v51, 0.0
  %177 = vadd.xlane.f32.xlu0 %v176
  %v178 = vpop.xlane.xlu0 %177
  %v179 = vsel %vm55, %v52, 0.0
  %180 = vadd.xlane.f32.xlu0 %v179
  %v181 = vpop.xlane.xlu0 %180
  %v182 = vsel %vm55, %v53, 0.0
  %183 = vadd.xlane.f32.xlu0 %v182
  %v184 = vpop.xlane.xlu0 %183
  %v185 = vsel %vm55, %v54, 0.0
  %186 = vadd.xlane.f32.xlu0 %v185
  %v187 = vpop.xlane.xlu0 %186
  %v188 = vmul.f32 %v58, 0.020408163
  %v189 = vmul.f32 %v61, 0.020408163
  %v190 = vmul.f32 %v64, 0.020408163
  %v191 = vmul.f32 %v67, 0.020408163
  %v192 = vmul.f32 %v70, 0.020408163
  %v193 = vmul.f32 %v73, 0.020408163
  %v194 = vmul.f32 %v76, 0.020408163
  %v195 = vmul.f32 %v79, 0.020408163
  %v196 = vmul.f32 %v82, 0.020408163
  %v197 = vmul.f32 %v85, 0.020408163
  %v198 = vmul.f32 %v88, 0.020408163
  %v199 = vmul.f32 %v91, 0.020408163
  %v200 = vmul.f32 %v94, 0.020408163
  %v201 = vmul.f32 %v97, 0.020408163
  %v202 = vmul.f32 %v100, 0.020408163
  %v203 = vmul.f32 %v103, 0.020408163
  %v204 = vmul.f32 %v106, 0.020408163
  %v205 = vmul.f32 %v109, 0.020408163
  %v206 = vmul.f32 %v112, 0.020408163
  %v207 = vmul.f32 %v115, 0.020408163
  %v208 = vmul.f32 %v118, 0.020408163
  %v209 = vmul.f32 %v121, 0.020408163
  %v210 = vmul.f32 %v124, 0.020408163
  %v211 = vmul.f32 %v127, 0.020408163
  %v212 = vmul.f32 %v130, 0.020408163
  %v213 = vmul.f32 %v133, 0.020408163
  %v214 = vmul.f32 %v136, 0.020408163
  %v215 = vmul.f32 %v139, 0.020408163
  %v216 = vmul.f32 %v142, 0.020408163
  %v217 = vmul.f32 %v145, 0.020408163
  %v218 = vmul.f32 %v148, 0.020408163
  %v219 = vmul.f32 %v151, 0.020408163
  %v220 = vmul.f32 %v154, 0.020408163
  %v221 = vmul.f32 %v157, 0.020408163
  %v222 = vmul.f32 %v160, 0.020408163
  %v223 = vmul.f32 %v163, 0.020408163
  %v224 = vmul.f32 %v166, 0.020408163
  %v225 = vmul.f32 %v169, 0.020408163
  %v226 = vmul.f32 %v172, 0.020408163
  %v227 = vmul.f32 %v175, 0.020408163
  %v228 = vmul.f32 %v178, 0.020408163
  %v229 = vmul.f32 %v181, 0.020408163
  %v230 = vmul.f32 %v184, 0.020408163
  %v231 = vmul.f32 %v187, 0.020408163
  %v232 = vsub.f32 %v11, %v188
  %v233 = vsub.f32 %v12, %v189
  %v234 = vsub.f32 %v13, %v190
  %v235 = vsub.f32 %v14, %v191
  %v236 = vsub.f32 %v15, %v192
  %v237 = vsub.f32 %v16, %v193
  %v238 = vsub.f32 %v17, %v194
  %v239 = vsub.f32 %v18, %v195
  %v240 = vsub.f32 %v19, %v196
  %v241 = vsub.f32 %v20, %v197
  %v242 = vsub.f32 %v21, %v198
  %v243 = vsub.f32 %v22, %v199
  %v244 = vsub.f32 %v23, %v200
  %v245 = vsub.f32 %v24, %v201
  %v246 = vsub.f32 %v25, %v202
  %v247 = vsub.f32 %v26, %v203
  %v248 = vsub.f32 %v27, %v204
  %v249 = vsub.f32 %v28, %v205
  %v250 = vsub.f32 %v29, %v206
  %v251 = vsub.f32 %v30, %v207
  %v252 = vsub.f32 %v31, %v208
  %v253 = vsub.f32 %v32, %v209
  %v254 = vsub.f32 %v33, %v210
  %v255 = vsub.f32 %v34, %v211
  %v256 = vsub.f32 %v35, %v212
  %v257 = vsub.f32 %v36, %v213
  %v258 = vsub.f32 %v37, %v214
  %v259 = vsub.f32 %v38, %v215
  %v260 = vsub.f32 %v39, %v216
  %v261 = vsub.f32 %v40, %v217
  %v262 = vsub.f32 %v41, %v218
  %v263 = vsub.f32 %v42, %v219
  %v264 = vsub.f32 %v43, %v220
  %v265 = vsub.f32 %v44, %v221
  %v266 = vsub.f32 %v45, %v222
  %v267 = vsub.f32 %v46, %v223
  %v268 = vsub.f32 %v47, %v224
  %v269 = vsub.f32 %v48, %v225
  %v270 = vsub.f32 %v49, %v226
  %v271 = vsub.f32 %v50, %v227
  %v272 = vsub.f32 %v51, %v228
  %v273 = vsub.f32 %v52, %v229
  %v274 = vsub.f32 %v53, %v230
  %v275 = vsub.f32 %v54, %v231
  %v276 = vmul.f32 %v232, %v232
  %v277 = vmul.f32 %v233, %v233
  %v278 = vmul.f32 %v234, %v234
  %v279 = vmul.f32 %v235, %v235
  %v280 = vmul.f32 %v236, %v236
  %v281 = vmul.f32 %v237, %v237
  %v282 = vmul.f32 %v238, %v238
  %v283 = vmul.f32 %v239, %v239
  %v284 = vmul.f32 %v240, %v240
  %v285 = vmul.f32 %v241, %v241
  %v286 = vmul.f32 %v242, %v242
  %v287 = vmul.f32 %v243, %v243
  %v288 = vmul.f32 %v244, %v244
  %v289 = vmul.f32 %v245, %v245
  %v290 = vmul.f32 %v246, %v246
  %v291 = vmul.f32 %v247, %v247
  %v292 = vmul.f32 %v248, %v248
  %v293 = vmul.f32 %v249, %v249
  %v294 = vmul.f32 %v250, %v250
  %v295 = vmul.f32 %v251, %v251
  %v296 = vmul.f32 %v252, %v252
  %v297 = vmul.f32 %v253, %v253
  %v298 = vmul.f32 %v254, %v254
  %v299 = vmul.f32 %v255, %v255
  %v300 = vmul.f32 %v256, %v256
  %v301 = vmul.f32 %v257, %v257
  %v302 = vmul.f32 %v258, %v258
  %v303 = vmul.f32 %v259, %v259
  %v304 = vmul.f32 %v260, %v260
  %v305 = vmul.f32 %v261, %v261
  %v306 = vmul.f32 %v262, %v262
  %v307 = vmul.f32 %v263, %v263
  %v308 = vmul.f32 %v264, %v264
  %v309 = vmul.f32 %v265, %v265
  %v310 = vmul.f32 %v266, %v266
  %v311 = vmul.f32 %v267, %v267
  %v312 = vmul.f32 %v268, %v268
  %v313 = vmul.f32 %v269, %v269
  %v314 = vmul.f32 %v270, %v270
  %v315 = vmul.f32 %v271, %v271
  %v316 = vmul.f32 %v272, %v272
  %v317 = vmul.f32 %v273, %v273
  %v318 = vmul.f32 %v274, %v274
  %v319 = vmul.f32 %v275, %v275
  %v320 = vsel %vm55, %v276, 0.0
  %321 = vadd.xlane.f32.xlu0 %v320
  %v322 = vpop.xlane.xlu0 %321
  %v323 = vsel %vm55, %v277, 0.0
  %324 = vadd.xlane.f32.xlu0 %v323
  %v325 = vpop.xlane.xlu0 %324
  %v326 = vsel %vm55, %v278, 0.0
  %327 = vadd.xlane.f32.xlu0 %v326
  %v328 = vpop.xlane.xlu0 %327
  %v329 = vsel %vm55, %v279, 0.0
  %330 = vadd.xlane.f32.xlu0 %v329
  %v331 = vpop.xlane.xlu0 %330
  %v332 = vsel %vm55, %v280, 0.0
  %333 = vadd.xlane.f32.xlu0 %v332
  %v334 = vpop.xlane.xlu0 %333
  %v335 = vsel %vm55, %v281, 0.0
  %336 = vadd.xlane.f32.xlu0 %v335
  %v337 = vpop.xlane.xlu0 %336
  %v338 = vsel %vm55, %v282, 0.0
  %339 = vadd.xlane.f32.xlu0 %v338
  %v340 = vpop.xlane.xlu0 %339
  %v341 = vsel %vm55, %v283, 0.0
  %342 = vadd.xlane.f32.xlu0 %v341
  %v343 = vpop.xlane.xlu0 %342
  %v344 = vsel %vm55, %v284, 0.0
  %345 = vadd.xlane.f32.xlu0 %v344
  %v346 = vpop.xlane.xlu0 %345
  %v347 = vsel %vm55, %v285, 0.0
  %348 = vadd.xlane.f32.xlu0 %v347
  %v349 = vpop.xlane.xlu0 %348
  %v350 = vsel %vm55, %v286, 0.0
  %351 = vadd.xlane.f32.xlu0 %v350
  %v352 = vpop.xlane.xlu0 %351
  %v353 = vsel %vm55, %v287, 0.0
  %354 = vadd.xlane.f32.xlu0 %v353
  %v355 = vpop.xlane.xlu0 %354
  %v356 = vsel %vm55, %v288, 0.0
  %357 = vadd.xlane.f32.xlu0 %v356
  %v358 = vpop.xlane.xlu0 %357
  %v359 = vsel %vm55, %v289, 0.0
  %360 = vadd.xlane.f32.xlu0 %v359
  %v361 = vpop.xlane.xlu0 %360
  %v362 = vsel %vm55, %v290, 0.0
  %363 = vadd.xlane.f32.xlu0 %v362
  %v364 = vpop.xlane.xlu0 %363
  %v365 = vsel %vm55, %v291, 0.0
  %366 = vadd.xlane.f32.xlu0 %v365
  %v367 = vpop.xlane.xlu0 %366
  %v368 = vsel %vm55, %v292, 0.0
  %369 = vadd.xlane.f32.xlu0 %v368
  %v370 = vpop.xlane.xlu0 %369
  %v371 = vsel %vm55, %v293, 0.0
  %372 = vadd.xlane.f32.xlu0 %v371
  %v373 = vpop.xlane.xlu0 %372
  %v374 = vsel %vm55, %v294, 0.0
  %375 = vadd.xlane.f32.xlu0 %v374
  %v376 = vpop.xlane.xlu0 %375
  %v377 = vsel %vm55, %v295, 0.0
  %378 = vadd.xlane.f32.xlu0 %v377
  %v379 = vpop.xlane.xlu0 %378
  %v380 = vsel %vm55, %v296, 0.0
  %381 = vadd.xlane.f32.xlu0 %v380
  %v382 = vpop.xlane.xlu0 %381
  %v383 = vsel %vm55, %v297, 0.0
  %384 = vadd.xlane.f32.xlu0 %v383
  %v385 = vpop.xlane.xlu0 %384
  %v386 = vsel %vm55, %v298, 0.0
  %387 = vadd.xlane.f32.xlu0 %v386
  %v388 = vpop.xlane.xlu0 %387
  %v389 = vsel %vm55, %v299, 0.0
  %390 = vadd.xlane.f32.xlu0 %v389
  %v391 = vpop.xlane.xlu0 %390
  %v392 = vsel %vm55, %v300, 0.0
  %393 = vadd.xlane.f32.xlu0 %v392
  %v394 = vpop.xlane.xlu0 %393
  %v395 = vsel %vm55, %v301, 0.0
  %396 = vadd.xlane.f32.xlu0 %v395
  %v397 = vpop.xlane.xlu0 %396
  %v398 = vsel %vm55, %v302, 0.0
  %399 = vadd.xlane.f32.xlu0 %v398
  %v400 = vpop.xlane.xlu0 %399
  %v401 = vsel %vm55, %v303, 0.0
  %402 = vadd.xlane.f32.xlu0 %v401
  %v403 = vpop.xlane.xlu0 %402
  %v404 = vsel %vm55, %v304, 0.0
  %405 = vadd.xlane.f32.xlu0 %v404
  %v406 = vpop.xlane.xlu0 %405
  %v407 = vsel %vm55, %v305, 0.0
  %408 = vadd.xlane.f32.xlu0 %v407
  %v409 = vpop.xlane.xlu0 %408
  %v410 = vsel %vm55, %v306, 0.0
  %411 = vadd.xlane.f32.xlu0 %v410
  %v412 = vpop.xlane.xlu0 %411
  %v413 = vsel %vm55, %v307, 0.0
  %414 = vadd.xlane.f32.xlu0 %v413
  %v415 = vpop.xlane.xlu0 %414
  %v416 = vsel %vm55, %v308, 0.0
  %417 = vadd.xlane.f32.xlu0 %v416
  %v418 = vpop.xlane.xlu0 %417
  %v419 = vsel %vm55, %v309, 0.0
  %420 = vadd.xlane.f32.xlu0 %v419
  %v421 = vpop.xlane.xlu0 %420
  %v422 = vsel %vm55, %v310, 0.0
  %423 = vadd.xlane.f32.xlu0 %v422
  %v424 = vpop.xlane.xlu0 %423
  %v425 = vsel %vm55, %v311, 0.0
  %426 = vadd.xlane.f32.xlu0 %v425
  %v427 = vpop.xlane.xlu0 %426
  %v428 = vsel %vm55, %v312, 0.0
  %429 = vadd.xlane.f32.xlu0 %v428
  %v430 = vpop.xlane.xlu0 %429
  %v431 = vsel %vm55, %v313, 0.0
  %432 = vadd.xlane.f32.xlu0 %v431
  %v433 = vpop.xlane.xlu0 %432
  %v434 = vsel %vm55, %v314, 0.0
  %435 = vadd.xlane.f32.xlu0 %v434
  %v436 = vpop.xlane.xlu0 %435
  %v437 = vsel %vm55, %v315, 0.0
  %438 = vadd.xlane.f32.xlu0 %v437
  %v439 = vpop.xlane.xlu0 %438
  %v440 = vsel %vm55, %v316, 0.0
  %441 = vadd.xlane.f32.xlu0 %v440
  %v442 = vpop.xlane.xlu0 %441
  %v443 = vsel %vm55, %v317, 0.0
  %444 = vadd.xlane.f32.xlu0 %v443
  %v445 = vpop.xlane.xlu0 %444
  %v446 = vsel %vm55, %v318, 0.0
  %447 = vadd.xlane.f32.xlu0 %v446
  %v448 = vpop.xlane.xlu0 %447
  %v449 = vsel %vm55, %v319, 0.0
  %450 = vadd.xlane.f32.xlu0 %v449
  %v451 = vpop.xlane.xlu0 %450
  %v452 = vmul.f32 %v322, 0.020408163
  %v453 = vmul.f32 %v325, 0.020408163
  %v454 = vmul.f32 %v328, 0.020408163
  %v455 = vmul.f32 %v331, 0.020408163
  %v456 = vmul.f32 %v334, 0.020408163
  %v457 = vmul.f32 %v337, 0.020408163
  %v458 = vmul.f32 %v340, 0.020408163
  %v459 = vmul.f32 %v343, 0.020408163
  %v460 = vmul.f32 %v346, 0.020408163
  %v461 = vmul.f32 %v349, 0.020408163
  %v462 = vmul.f32 %v352, 0.020408163
  %v463 = vmul.f32 %v355, 0.020408163
  %v464 = vmul.f32 %v358, 0.020408163
  %v465 = vmul.f32 %v361, 0.020408163
  %v466 = vmul.f32 %v364, 0.020408163
  %v467 = vmul.f32 %v367, 0.020408163
  %v468 = vmul.f32 %v370, 0.020408163
  %v469 = vmul.f32 %v373, 0.020408163
  %v470 = vmul.f32 %v376, 0.020408163
  %v471 = vmul.f32 %v379, 0.020408163
  %v472 = vmul.f32 %v382, 0.020408163
  %v473 = vmul.f32 %v385, 0.020408163
  %v474 = vmul.f32 %v388, 0.020408163
  %v475 = vmul.f32 %v391, 0.020408163
  %v476 = vmul.f32 %v394, 0.020408163
  %v477 = vmul.f32 %v397, 0.020408163
  %v478 = vmul.f32 %v400, 0.020408163
  %v479 = vmul.f32 %v403, 0.020408163
  %v480 = vmul.f32 %v406, 0.020408163
  %v481 = vmul.f32 %v409, 0.020408163
  %v482 = vmul.f32 %v412, 0.020408163
  %v483 = vmul.f32 %v415, 0.020408163
  %v484 = vmul.f32 %v418, 0.020408163
  %v485 = vmul.f32 %v421, 0.020408163
  %v486 = vmul.f32 %v424, 0.020408163
  %v487 = vmul.f32 %v427, 0.020408163
  %v488 = vmul.f32 %v430, 0.020408163
  %v489 = vmul.f32 %v433, 0.020408163
  %v490 = vmul.f32 %v436, 0.020408163
  %v491 = vmul.f32 %v439, 0.020408163
  %v492 = vmul.f32 %v442, 0.020408163
  %v493 = vmul.f32 %v445, 0.020408163
  %v494 = vmul.f32 %v448, 0.020408163
  %v495 = vmul.f32 %v451, 0.020408163
  %v496 = vadd.f32 %v452, 1e-05
  %v497 = vadd.f32 %v453, 1e-05
  %v498 = vadd.f32 %v454, 1e-05
  %v499 = vadd.f32 %v455, 1e-05
  %v500 = vadd.f32 %v456, 1e-05
  %v501 = vadd.f32 %v457, 1e-05
  %v502 = vadd.f32 %v458, 1e-05
  %v503 = vadd.f32 %v459, 1e-05
  %v504 = vadd.f32 %v460, 1e-05
  %v505 = vadd.f32 %v461, 1e-05
  %v506 = vadd.f32 %v462, 1e-05
  %v507 = vadd.f32 %v463, 1e-05
  %v508 = vadd.f32 %v464, 1e-05
  %v509 = vadd.f32 %v465, 1e-05
  %v510 = vadd.f32 %v466, 1e-05
  %v511 = vadd.f32 %v467, 1e-05
  %v512 = vadd.f32 %v468, 1e-05
  %v513 = vadd.f32 %v469, 1e-05
  %v514 = vadd.f32 %v470, 1e-05
  %v515 = vadd.f32 %v471, 1e-05
  %v516 = vadd.f32 %v472, 1e-05
  %v517 = vadd.f32 %v473, 1e-05
  %v518 = vadd.f32 %v474, 1e-05
  %v519 = vadd.f32 %v475, 1e-05
  %v520 = vadd.f32 %v476, 1e-05
  %v521 = vadd.f32 %v477, 1e-05
  %v522 = vadd.f32 %v478, 1e-05
  %v523 = vadd.f32 %v479, 1e-05
  %v524 = vadd.f32 %v480, 1e-05
  %v525 = vadd.f32 %v481, 1e-05
  %v526 = vadd.f32 %v482, 1e-05
  %v527 = vadd.f32 %v483, 1e-05
  %v528 = vadd.f32 %v484, 1e-05
  %v529 = vadd.f32 %v485, 1e-05
  %v530 = vadd.f32 %v486, 1e-05
  %v531 = vadd.f32 %v487, 1e-05
  %v532 = vadd.f32 %v488, 1e-05
  %v533 = vadd.f32 %v489, 1e-05
  %v534 = vadd.f32 %v490, 1e-05
  %v535 = vadd.f32 %v491, 1e-05
  %v536 = vadd.f32 %v492, 1e-05
  %v537 = vadd.f32 %v493, 1e-05
  %v538 = vadd.f32 %v494, 1e-05
  %v539 = vadd.f32 %v495, 1e-05
  %v540 = vrsqrt.pop %v496
  %v541 = vrsqrt.pop %v497
  %v542 = vrsqrt.pop %v498
  %v543 = vrsqrt.pop %v499
  %v544 = vrsqrt.pop %v500
  %v545 = vrsqrt.pop %v501
  %v546 = vrsqrt.pop %v502
  %v547 = vrsqrt.pop %v503
  %v548 = vrsqrt.pop %v504
  %v549 = vrsqrt.pop %v505
  %v550 = vrsqrt.pop %v506
  %v551 = vrsqrt.pop %v507
  %v552 = vrsqrt.pop %v508
  %v553 = vrsqrt.pop %v509
  %v554 = vrsqrt.pop %v510
  %v555 = vrsqrt.pop %v511
  %v556 = vrsqrt.pop %v512
  %v557 = vrsqrt.pop %v513
  %v558 = vrsqrt.pop %v514
  %v559 = vrsqrt.pop %v515
  %v560 = vrsqrt.pop %v516
  %v561 = vrsqrt.pop %v517
  %v562 = vrsqrt.pop %v518
  %v563 = vrsqrt.pop %v519
  %v564 = vrsqrt.pop %v520
  %v565 = vrsqrt.pop %v521
  %v566 = vrsqrt.pop %v522
  %v567 = vrsqrt.pop %v523
  %v568 = vrsqrt.pop %v524
  %v569 = vrsqrt.pop %v525
  %v570 = vrsqrt.pop %v526
  %v571 = vrsqrt.pop %v527
  %v572 = vrsqrt.pop %v528
  %v573 = vrsqrt.pop %v529
  %v574 = vrsqrt.pop %v530
  %v575 = vrsqrt.pop %v531
  %v576 = vrsqrt.pop %v532
  %v577 = vrsqrt.pop %v533
  %v578 = vrsqrt.pop %v534
  %v579 = vrsqrt.pop %v535
  %v580 = vrsqrt.pop %v536
  %v581 = vrsqrt.pop %v537
  %v582 = vrsqrt.pop %v538
  %v583 = vrsqrt.pop %v539
  %v584 = vld [vmem:[%s1] sm:$0xff]
  %v585 = vld [vmem:[%s1 + $0x8] sm:$0xff]
  %v586 = vld [vmem:[%s1 + $0x10] sm:$0xff]
  %v587 = vld [vmem:[%s1 + $0x18] sm:$0xff]
  %v588 = vld [vmem:[%s1 + $0x20] sm:$0xff]
  %v589 = vld [vmem:[%s1 + $0x28] sm:$0xff]
  %v590 = vld [vmem:[%s1 + $0x30] sm:$0xff]
  %v591 = vld [vmem:[%s1 + $0x38] sm:$0xff]
  %v592 = vld [vmem:[%s1 + $0x40] sm:$0xff]
  %v593 = vld [vmem:[%s1 + $0x48] sm:$0xff]
  %v594 = vld [vmem:[%s1 + $0x50] sm:$0xff]
  %v595 = vld [vmem:[%s1 + $0x58] sm:$0xff]
  %v596 = vld [vmem:[%s1 + $0x60] sm:$0xff]
  %v597 = vld [vmem:[%s1 + $0x68] sm:$0xff]
  %v598 = vld [vmem:[%s1 + $0x70] sm:$0xff]
  %v599 = vld [vmem:[%s1 + $0x78] sm:$0xff]
  %v600 = vld [vmem:[%s1 + $0x80] sm:$0xff]
  %v601 = vld [vmem:[%s1 + $0x88] sm:$0xff]
  %v602 = vld [vmem:[%s1 + $0x90] sm:$0xff]
  %v603 = vld [vmem:[%s1 + $0x98] sm:$0xff]
  %v604 = vld [vmem:[%s1 + $0xa0] sm:$0xff]
  %v605 = vld [vmem:[%s1 + $0xa8] sm:$0xff]
  %v606 = vld [vmem:[%s1 + $0xb0] sm:$0xff]
  %v607 = vld [vmem:[%s1 + $0xb8] sm:$0xff]
  %v608 = vld [vmem:[%s1 + $0xc0] sm:$0xff]
  %v609 = vld [vmem:[%s1 + $0xc8] sm:$0xff]
  %v610 = vld [vmem:[%s1 + $0xd0] sm:$0xff]
  %v611 = vld [vmem:[%s1 + $0xd8] sm:$0xff]
  %v612 = vld [vmem:[%s1 + $0xe0] sm:$0xff]
  %v613 = vld [vmem:[%s1 + $0xe8] sm:$0xff]
  %v614 = vld [vmem:[%s1 + $0xf0] sm:$0xff]
  %v615 = vld [vmem:[%s1 + $0xf8] sm:$0xff]
  %v616 = vld [vmem:[%s1 + $0x100] sm:$0xff]
  %v617 = vld [vmem:[%s1 + $0x108] sm:$0xff]
  %v618 = vld [vmem:[%s1 + $0x110] sm:$0xff]
  %v619 = vld [vmem:[%s1 + $0x118] sm:$0xff]
  %v620 = vld [vmem:[%s1 + $0x120] sm:$0xff]
  %v621 = vld [vmem:[%s1 + $0x128] sm:$0xff]
  %v622 = vld [vmem:[%s1 + $0x130] sm:$0xff]
  %v623 = vld [vmem:[%s1 + $0x138] sm:$0xff]
  %v624 = vld [vmem:[%s1 + $0x140] sm:$0xff]
  %v625 = vld [vmem:[%s1 + $0x148] sm:$0xff]
  %v626 = vld [vmem:[%s1 + $0x150] sm:$0xff]
  %v627 = vld [vmem:[%s1 + $0x158] sm:$0xff]
  %v628 = vmul.f32 %v584, %v540
  %v629 = vmul.f32 %v585, %v541
  %v630 = vmul.f32 %v586, %v542
  %v631 = vmul.f32 %v587, %v543
  %v632 = vmul.f32 %v588, %v544
  %v633 = vmul.f32 %v589, %v545
  %v634 = vmul.f32 %v590, %v546
  %v635 = vmul.f32 %v591, %v547
  %v636 = vmul.f32 %v592, %v548
  %v637 = vmul.f32 %v593, %v549
  %v638 = vmul.f32 %v594, %v550
  %v639 = vmul.f32 %v595, %v551
  %v640 = vmul.f32 %v596, %v552
  %v641 = vmul.f32 %v597, %v553
  %v642 = vmul.f32 %v598, %v554
  %v643 = vmul.f32 %v599, %v555
  %v644 = vmul.f32 %v600, %v556
  %v645 = vmul.f32 %v601, %v557
  %v646 = vmul.f32 %v602, %v558
  %v647 = vmul.f32 %v603, %v559
  %v648 = vmul.f32 %v604, %v560
  %v649 = vmul.f32 %v605, %v561
  %v650 = vmul.f32 %v606, %v562
  %v651 = vmul.f32 %v607, %v563
  %v652 = vmul.f32 %v608, %v564
  %v653 = vmul.f32 %v609, %v565
  %v654 = vmul.f32 %v610, %v566
  %v655 = vmul.f32 %v611, %v567
  %v656 = vmul.f32 %v612, %v568
  %v657 = vmul.f32 %v613, %v569
  %v658 = vmul.f32 %v614, %v570
  %v659 = vmul.f32 %v615, %v571
  %v660 = vmul.f32 %v616, %v572
  %v661 = vmul.f32 %v617, %v573
  %v662 = vmul.f32 %v618, %v574
  %v663 = vmul.f32 %v619, %v575
  %v664 = vmul.f32 %v620, %v576
  %v665 = vmul.f32 %v621, %v577
  %v666 = vmul.f32 %v622, %v578
  %v667 = vmul.f32 %v623, %v579
  %v668 = vmul.f32 %v624, %v580
  %v669 = vmul.f32 %v625, %v581
  %v670 = vmul.f32 %v626, %v582
  %v671 = vmul.f32 %v627, %v583
  %673 = vset.pattern.permute.xlu0 0
  %674 = vperm.xlu0 %673, %v628
  %v675 = vpop.permute.xlu0 %674
  %678 = vset.pattern.permute.xlu0 0
  %679 = vperm.xlu0 %678, %v629
  %v680 = vpop.permute.xlu0 %679
  %683 = vset.pattern.permute.xlu0 0
  %684 = vperm.xlu0 %683, %v630
  %v685 = vpop.permute.xlu0 %684
  %688 = vset.pattern.permute.xlu0 0
  %689 = vperm.xlu0 %688, %v631
  %v690 = vpop.permute.xlu0 %689
  %693 = vset.pattern.permute.xlu0 0
  %694 = vperm.xlu0 %693, %v632
  %v695 = vpop.permute.xlu0 %694
  %698 = vset.pattern.permute.xlu0 0
  %699 = vperm.xlu0 %698, %v633
  %v700 = vpop.permute.xlu0 %699
  %703 = vset.pattern.permute.xlu0 0
  %704 = vperm.xlu0 %703, %v634
  %v705 = vpop.permute.xlu0 %704
  %708 = vset.pattern.permute.xlu0 0
  %709 = vperm.xlu0 %708, %v635
  %v710 = vpop.permute.xlu0 %709
  %713 = vset.pattern.permute.xlu0 0
  %714 = vperm.xlu0 %713, %v636
  %v715 = vpop.permute.xlu0 %714
  %718 = vset.pattern.permute.xlu0 0
  %719 = vperm.xlu0 %718, %v637
  %v720 = vpop.permute.xlu0 %719
  %723 = vset.pattern.permute.xlu0 0
  %724 = vperm.xlu0 %723, %v638
  %v725 = vpop.permute.xlu0 %724
  %728 = vset.pattern.permute.xlu0 0
  %729 = vperm.xlu0 %728, %v639
  %v730 = vpop.permute.xlu0 %729
  %733 = vset.pattern.permute.xlu0 0
  %734 = vperm.xlu0 %733, %v640
  %v735 = vpop.permute.xlu0 %734
  %738 = vset.pattern.permute.xlu0 0
  %739 = vperm.xlu0 %738, %v641
  %v740 = vpop.permute.xlu0 %739
  %743 = vset.pattern.permute.xlu0 0
  %744 = vperm.xlu0 %743, %v642
  %v745 = vpop.permute.xlu0 %744
  %748 = vset.pattern.permute.xlu0 0
  %749 = vperm.xlu0 %748, %v643
  %v750 = vpop.permute.xlu0 %749
  %753 = vset.pattern.permute.xlu0 0
  %754 = vperm.xlu0 %753, %v644
  %v755 = vpop.permute.xlu0 %754
  %758 = vset.pattern.permute.xlu0 0
  %759 = vperm.xlu0 %758, %v645
  %v760 = vpop.permute.xlu0 %759
  %763 = vset.pattern.permute.xlu0 0
  %764 = vperm.xlu0 %763, %v646
  %v765 = vpop.permute.xlu0 %764
  %768 = vset.pattern.permute.xlu0 0
  %769 = vperm.xlu0 %768, %v647
  %v770 = vpop.permute.xlu0 %769
  %773 = vset.pattern.permute.xlu0 0
  %774 = vperm.xlu0 %773, %v648
  %v775 = vpop.permute.xlu0 %774
  %778 = vset.pattern.permute.xlu0 0
  %779 = vperm.xlu0 %778, %v649
  %v780 = vpop.permute.xlu0 %779
  %783 = vset.pattern.permute.xlu0 0
  %784 = vperm.xlu0 %783, %v650
  %v785 = vpop.permute.xlu0 %784
  %788 = vset.pattern.permute.xlu0 0
  %789 = vperm.xlu0 %788, %v651
  %v790 = vpop.permute.xlu0 %789
  %793 = vset.pattern.permute.xlu0 0
  %794 = vperm.xlu0 %793, %v652
  %v795 = vpop.permute.xlu0 %794
  %798 = vset.pattern.permute.xlu0 0
  %799 = vperm.xlu0 %798, %v653
  %v800 = vpop.permute.xlu0 %799
  %803 = vset.pattern.permute.xlu0 0
  %804 = vperm.xlu0 %803, %v654
  %v805 = vpop.permute.xlu0 %804
  %808 = vset.pattern.permute.xlu0 0
  %809 = vperm.xlu0 %808, %v655
  %v810 = vpop.permute.xlu0 %809
  %813 = vset.pattern.permute.xlu0 0
  %814 = vperm.xlu0 %813, %v656
  %v815 = vpop.permute.xlu0 %814
  %818 = vset.pattern.permute.xlu0 0
  %819 = vperm.xlu0 %818, %v657
  %v820 = vpop.permute.xlu0 %819
  %823 = vset.pattern.permute.xlu0 0
  %824 = vperm.xlu0 %823, %v658
  %v825 = vpop.permute.xlu0 %824
  %828 = vset.pattern.permute.xlu0 0
  %829 = vperm.xlu0 %828, %v659
  %v830 = vpop.permute.xlu0 %829
  %833 = vset.pattern.permute.xlu0 0
  %834 = vperm.xlu0 %833, %v660
  %v835 = vpop.permute.xlu0 %834
  %838 = vset.pattern.permute.xlu0 0
  %839 = vperm.xlu0 %838, %v661
  %v840 = vpop.permute.xlu0 %839
  %843 = vset.pattern.permute.xlu0 0
  %844 = vperm.xlu0 %843, %v662
  %v845 = vpop.permute.xlu0 %844
  %848 = vset.pattern.permute.xlu0 0
  %849 = vperm.xlu0 %848, %v663
  %v850 = vpop.permute.xlu0 %849
  %853 = vset.pattern.permute.xlu0 0
  %854 = vperm.xlu0 %853, %v664
  %v855 = vpop.permute.xlu0 %854
  %858 = vset.pattern.permute.xlu0 0
  %859 = vperm.xlu0 %858, %v665
  %v860 = vpop.permute.xlu0 %859
  %863 = vset.pattern.permute.xlu0 0
  %864 = vperm.xlu0 %863, %v666
  %v865 = vpop.permute.xlu0 %864
  %868 = vset.pattern.permute.xlu0 0
  %869 = vperm.xlu0 %868, %v667
  %v870 = vpop.permute.xlu0 %869
  %873 = vset.pattern.permute.xlu0 0
  %874 = vperm.xlu0 %873, %v668
  %v875 = vpop.permute.xlu0 %874
  %878 = vset.pattern.permute.xlu0 0
  %879 = vperm.xlu0 %878, %v669
  %v880 = vpop.permute.xlu0 %879
  %883 = vset.pattern.permute.xlu0 0
  %884 = vperm.xlu0 %883, %v670
  %v885 = vpop.permute.xlu0 %884
  %888 = vset.pattern.permute.xlu0 0
  %889 = vperm.xlu0 %888, %v671
  %v890 = vpop.permute.xlu0 %889
  %v892 = vmul.f32 %v232, %v675
  %v893 = vmul.f32 %v233, %v680
  %v894 = vmul.f32 %v234, %v685
  %v895 = vmul.f32 %v235, %v690
  %v896 = vmul.f32 %v236, %v695
  %v897 = vmul.f32 %v237, %v700
  %v898 = vmul.f32 %v238, %v705
  %v899 = vmul.f32 %v239, %v710
  %v900 = vmul.f32 %v240, %v715
  %v901 = vmul.f32 %v241, %v720
  %v902 = vmul.f32 %v242, %v725
  %v903 = vmul.f32 %v243, %v730
  %v904 = vmul.f32 %v244, %v735
  %v905 = vmul.f32 %v245, %v740
  %v906 = vmul.f32 %v246, %v745
  %v907 = vmul.f32 %v247, %v750
  %v908 = vmul.f32 %v248, %v755
  %v909 = vmul.f32 %v249, %v760
  %v910 = vmul.f32 %v250, %v765
  %v911 = vmul.f32 %v251, %v770
  %v912 = vmul.f32 %v252, %v775
  %v913 = vmul.f32 %v253, %v780
  %v914 = vmul.f32 %v254, %v785
  %v915 = vmul.f32 %v255, %v790
  %v916 = vmul.f32 %v256, %v795
  %v917 = vmul.f32 %v257, %v800
  %v918 = vmul.f32 %v258, %v805
  %v919 = vmul.f32 %v259, %v810
  %v920 = vmul.f32 %v260, %v815
  %v921 = vmul.f32 %v261, %v820
  %v922 = vmul.f32 %v262, %v825
  %v923 = vmul.f32 %v263, %v830
  %v924 = vmul.f32 %v264, %v835
  %v925 = vmul.f32 %v265, %v840
  %v926 = vmul.f32 %v266, %v845
  %v927 = vmul.f32 %v267, %v850
  %v928 = vmul.f32 %v268, %v855
  %v929 = vmul.f32 %v269, %v860
  %v930 = vmul.f32 %v270, %v865
  %v931 = vmul.f32 %v271, %v870
  %v932 = vmul.f32 %v272, %v875
  %v933 = vmul.f32 %v273, %v880
  %v934 = vmul.f32 %v274, %v885
  %v935 = vmul.f32 %v275, %v890
  %937 = vset.pattern.permute.xlu0 1
  %938 = vperm.xlu0 %937, %v584
  %v939 = vpop.permute.xlu0 %938
  %942 = vset.pattern.permute.xlu0 1
  %943 = vperm.xlu0 %942, %v585
  %v944 = vpop.permute.xlu0 %943
  %947 = vset.pattern.permute.xlu0 1
  %948 = vperm.xlu0 %947, %v586
  %v949 = vpop.permute.xlu0 %948
  %952 = vset.pattern.permute.xlu0 1
  %953 = vperm.xlu0 %952, %v587
  %v954 = vpop.permute.xlu0 %953
  %957 = vset.pattern.permute.xlu0 1
  %958 = vperm.xlu0 %957, %v588
  %v959 = vpop.permute.xlu0 %958
  %962 = vset.pattern.permute.xlu0 1
  %963 = vperm.xlu0 %962, %v589
  %v964 = vpop.permute.xlu0 %963
  %967 = vset.pattern.permute.xlu0 1
  %968 = vperm.xlu0 %967, %v590
  %v969 = vpop.permute.xlu0 %968
  %972 = vset.pattern.permute.xlu0 1
  %973 = vperm.xlu0 %972, %v591
  %v974 = vpop.permute.xlu0 %973
  %977 = vset.pattern.permute.xlu0 1
  %978 = vperm.xlu0 %977, %v592
  %v979 = vpop.permute.xlu0 %978
  %982 = vset.pattern.permute.xlu0 1
  %983 = vperm.xlu0 %982, %v593
  %v984 = vpop.permute.xlu0 %983
  %987 = vset.pattern.permute.xlu0 1
  %988 = vperm.xlu0 %987, %v594
  %v989 = vpop.permute.xlu0 %988
  %992 = vset.pattern.permute.xlu0 1
  %993 = vperm.xlu0 %992, %v595
  %v994 = vpop.permute.xlu0 %993
  %997 = vset.pattern.permute.xlu0 1
  %998 = vperm.xlu0 %997, %v596
  %v999 = vpop.permute.xlu0 %998
  %1002 = vset.pattern.permute.xlu0 1
  %1003 = vperm.xlu0 %1002, %v597
  %v1004 = vpop.permute.xlu0 %1003
  %1007 = vset.pattern.permute.xlu0 1
  %1008 = vperm.xlu0 %1007, %v598
  %v1009 = vpop.permute.xlu0 %1008
  %1012 = vset.pattern.permute.xlu0 1
  %1013 = vperm.xlu0 %1012, %v599
  %v1014 = vpop.permute.xlu0 %1013
  %1017 = vset.pattern.permute.xlu0 1
  %1018 = vperm.xlu0 %1017, %v600
  %v1019 = vpop.permute.xlu0 %1018
  %1022 = vset.pattern.permute.xlu0 1
  %1023 = vperm.xlu0 %1022, %v601
  %v1024 = vpop.permute.xlu0 %1023
  %1027 = vset.pattern.permute.xlu0 1
  %1028 = vperm.xlu0 %1027, %v602
  %v1029 = vpop.permute.xlu0 %1028
  %1032 = vset.pattern.permute.xlu0 1
  %1033 = vperm.xlu0 %1032, %v603
  %v1034 = vpop.permute.xlu0 %1033
  %1037 = vset.pattern.permute.xlu0 1
  %1038 = vperm.xlu0 %1037, %v604
  %v1039 = vpop.permute.xlu0 %1038
  %1042 = vset.pattern.permute.xlu0 1
  %1043 = vperm.xlu0 %1042, %v605
  %v1044 = vpop.permute.xlu0 %1043
  %1047 = vset.pattern.permute.xlu0 1
  %1048 = vperm.xlu0 %1047, %v606
  %v1049 = vpop.permute.xlu0 %1048
  %1052 = vset.pattern.permute.xlu0 1
  %1053 = vperm.xlu0 %1052, %v607
  %v1054 = vpop.permute.xlu0 %1053
  %1057 = vset.pattern.permute.xlu0 1
  %1058 = vperm.xlu0 %1057, %v608
  %v1059 = vpop.permute.xlu0 %1058
  %1062 = vset.pattern.permute.xlu0 1
  %1063 = vperm.xlu0 %1062, %v609
  %v1064 = vpop.permute.xlu0 %1063
  %1067 = vset.pattern.permute.xlu0 1
  %1068 = vperm.xlu0 %1067, %v610
  %v1069 = vpop.permute.xlu0 %1068
  %1072 = vset.pattern.permute.xlu0 1
  %1073 = vperm.xlu0 %1072, %v611
  %v1074 = vpop.permute.xlu0 %1073
  %1077 = vset.pattern.permute.xlu0 1
  %1078 = vperm.xlu0 %1077, %v612
  %v1079 = vpop.permute.xlu0 %1078
  %1082 = vset.pattern.permute.xlu0 1
  %1083 = vperm.xlu0 %1082, %v613
  %v1084 = vpop.permute.xlu0 %1083
  %1087 = vset.pattern.permute.xlu0 1
  %1088 = vperm.xlu0 %1087, %v614
  %v1089 = vpop.permute.xlu0 %1088
  %1092 = vset.pattern.permute.xlu0 1
  %1093 = vperm.xlu0 %1092, %v615
  %v1094 = vpop.permute.xlu0 %1093
  %1097 = vset.pattern.permute.xlu0 1
  %1098 = vperm.xlu0 %1097, %v616
  %v1099 = vpop.permute.xlu0 %1098
  %1102 = vset.pattern.permute.xlu0 1
  %1103 = vperm.xlu0 %1102, %v617
  %v1104 = vpop.permute.xlu0 %1103
  %1107 = vset.pattern.permute.xlu0 1
  %1108 = vperm.xlu0 %1107, %v618
  %v1109 = vpop.permute.xlu0 %1108
  %1112 = vset.pattern.permute.xlu0 1
  %1113 = vperm.xlu0 %1112, %v619
  %v1114 = vpop.permute.xlu0 %1113
  %1117 = vset.pattern.permute.xlu0 1
  %1118 = vperm.xlu0 %1117, %v620
  %v1119 = vpop.permute.xlu0 %1118
  %1122 = vset.pattern.permute.xlu0 1
  %1123 = vperm.xlu0 %1122, %v621
  %v1124 = vpop.permute.xlu0 %1123
  %1127 = vset.pattern.permute.xlu0 1
  %1128 = vperm.xlu0 %1127, %v622
  %v1129 = vpop.permute.xlu0 %1128
  %1132 = vset.pattern.permute.xlu0 1
  %1133 = vperm.xlu0 %1132, %v623
  %v1134 = vpop.permute.xlu0 %1133
  %1137 = vset.pattern.permute.xlu0 1
  %1138 = vperm.xlu0 %1137, %v624
  %v1139 = vpop.permute.xlu0 %1138
  %1142 = vset.pattern.permute.xlu0 1
  %1143 = vperm.xlu0 %1142, %v625
  %v1144 = vpop.permute.xlu0 %1143
  %1147 = vset.pattern.permute.xlu0 1
  %1148 = vperm.xlu0 %1147, %v626
  %v1149 = vpop.permute.xlu0 %1148
  %1152 = vset.pattern.permute.xlu0 1
  %1153 = vperm.xlu0 %1152, %v627
  %v1154 = vpop.permute.xlu0 %1153
  %v1156 = vadd.f32 %v892, %v939
  %v1157 = vadd.f32 %v893, %v944
  %v1158 = vadd.f32 %v894, %v949
  %v1159 = vadd.f32 %v895, %v954
  %v1160 = vadd.f32 %v896, %v959
  %v1161 = vadd.f32 %v897, %v964
  %v1162 = vadd.f32 %v898, %v969
  %v1163 = vadd.f32 %v899, %v974
  %v1164 = vadd.f32 %v900, %v979
  %v1165 = vadd.f32 %v901, %v984
  %v1166 = vadd.f32 %v902, %v989
  %v1167 = vadd.f32 %v903, %v994
  %v1168 = vadd.f32 %v904, %v999
  %v1169 = vadd.f32 %v905, %v1004
  %v1170 = vadd.f32 %v906, %v1009
  %v1171 = vadd.f32 %v907, %v1014
  %v1172 = vadd.f32 %v908, %v1019
  %v1173 = vadd.f32 %v909, %v1024
  %v1174 = vadd.f32 %v910, %v1029
  %v1175 = vadd.f32 %v911, %v1034
  %v1176 = vadd.f32 %v912, %v1039
  %v1177 = vadd.f32 %v913, %v1044
  %v1178 = vadd.f32 %v914, %v1049
  %v1179 = vadd.f32 %v915, %v1054
  %v1180 = vadd.f32 %v916, %v1059
  %v1181 = vadd.f32 %v917, %v1064
  %v1182 = vadd.f32 %v918, %v1069
  %v1183 = vadd.f32 %v919, %v1074
  %v1184 = vadd.f32 %v920, %v1079
  %v1185 = vadd.f32 %v921, %v1084
  %v1186 = vadd.f32 %v922, %v1089
  %v1187 = vadd.f32 %v923, %v1094
  %v1188 = vadd.f32 %v924, %v1099
  %v1189 = vadd.f32 %v925, %v1104
  %v1190 = vadd.f32 %v926, %v1109
  %v1191 = vadd.f32 %v927, %v1114
  %v1192 = vadd.f32 %v928, %v1119
  %v1193 = vadd.f32 %v929, %v1124
  %v1194 = vadd.f32 %v930, %v1129
  %v1195 = vadd.f32 %v931, %v1134
  %v1196 = vadd.f32 %v932, %v1139
  %v1197 = vadd.f32 %v933, %v1144
  %v1198 = vadd.f32 %v934, %v1149
  %v1199 = vadd.f32 %v935, %v1154
  %v1200 = vmax.f32 %v1156, 0.0
  %v1201 = vmax.f32 %v1157, 0.0
  %v1202 = vmax.f32 %v1158, 0.0
  %v1203 = vmax.f32 %v1159, 0.0
  %v1204 = vmax.f32 %v1160, 0.0
  %v1205 = vmax.f32 %v1161, 0.0
  %v1206 = vmax.f32 %v1162, 0.0
  %v1207 = vmax.f32 %v1163, 0.0
  %v1208 = vmax.f32 %v1164, 0.0
  %v1209 = vmax.f32 %v1165, 0.0
  %v1210 = vmax.f32 %v1166, 0.0
  %v1211 = vmax.f32 %v1167, 0.0
  %v1212 = vmax.f32 %v1168, 0.0
  %v1213 = vmax.f32 %v1169, 0.0
  %v1214 = vmax.f32 %v1170, 0.0
  %v1215 = vmax.f32 %v1171, 0.0
  %v1216 = vmax.f32 %v1172, 0.0
  %v1217 = vmax.f32 %v1173, 0.0
  %v1218 = vmax.f32 %v1174, 0.0
  %v1219 = vmax.f32 %v1175, 0.0
  %v1220 = vmax.f32 %v1176, 0.0
  %v1221 = vmax.f32 %v1177, 0.0
  %v1222 = vmax.f32 %v1178, 0.0
  %v1223 = vmax.f32 %v1179, 0.0
  %v1224 = vmax.f32 %v1180, 0.0
  %v1225 = vmax.f32 %v1181, 0.0
  %v1226 = vmax.f32 %v1182, 0.0
  %v1227 = vmax.f32 %v1183, 0.0
  %v1228 = vmax.f32 %v1184, 0.0
  %v1229 = vmax.f32 %v1185, 0.0
  %v1230 = vmax.f32 %v1186, 0.0
  %v1231 = vmax.f32 %v1187, 0.0
  %v1232 = vmax.f32 %v1188, 0.0
  %v1233 = vmax.f32 %v1189, 0.0
  %v1234 = vmax.f32 %v1190, 0.0
  %v1235 = vmax.f32 %v1191, 0.0
  %v1236 = vmax.f32 %v1192, 0.0
  %v1237 = vmax.f32 %v1193, 0.0
  %v1238 = vmax.f32 %v1194, 0.0
  %v1239 = vmax.f32 %v1195, 0.0
  %v1240 = vmax.f32 %v1196, 0.0
  %v1241 = vmax.f32 %v1197, 0.0
  %v1242 = vmax.f32 %v1198, 0.0
  %v1243 = vmax.f32 %v1199, 0.0
  %1244 = vst.msk [vmem:[%s2] sm:$0xff] %vm55, %v1200
  %1245 = vst.msk [vmem:[%s2 + $0x8] sm:$0xff] %vm55, %v1201
  %1246 = vst.msk [vmem:[%s2 + $0x10] sm:$0xff] %vm55, %v1202
  %1247 = vst.msk [vmem:[%s2 + $0x18] sm:$0xff] %vm55, %v1203
  %1248 = vst.msk [vmem:[%s2 + $0x20] sm:$0xff] %vm55, %v1204
  %1249 = vst.msk [vmem:[%s2 + $0x28] sm:$0xff] %vm55, %v1205
  %1250 = vst.msk [vmem:[%s2 + $0x30] sm:$0xff] %vm55, %v1206
  %1251 = vst.msk [vmem:[%s2 + $0x38] sm:$0xff] %vm55, %v1207
  %1252 = vst.msk [vmem:[%s2 + $0x40] sm:$0xff] %vm55, %v1208
  %1253 = vst.msk [vmem:[%s2 + $0x48] sm:$0xff] %vm55, %v1209
  %1254 = vst.msk [vmem:[%s2 + $0x50] sm:$0xff] %vm55, %v1210
  %1255 = vst.msk [vmem:[%s2 + $0x58] sm:$0xff] %vm55, %v1211
  %1256 = vst.msk [vmem:[%s2 + $0x60] sm:$0xff] %vm55, %v1212
  %1257 = vst.msk [vmem:[%s2 + $0x68] sm:$0xff] %vm55, %v1213
  %1258 = vst.msk [vmem:[%s2 + $0x70] sm:$0xff] %vm55, %v1214
  %1259 = vst.msk [vmem:[%s2 + $0x78] sm:$0xff] %vm55, %v1215
  %1260 = vst.msk [vmem:[%s2 + $0x80] sm:$0xff] %vm55, %v1216
  %1261 = vst.msk [vmem:[%s2 + $0x88] sm:$0xff] %vm55, %v1217
  %1262 = vst.msk [vmem:[%s2 + $0x90] sm:$0xff] %vm55, %v1218
  %1263 = vst.msk [vmem:[%s2 + $0x98] sm:$0xff] %vm55, %v1219
  %1264 = vst.msk [vmem:[%s2 + $0xa0] sm:$0xff] %vm55, %v1220
  %1265 = vst.msk [vmem:[%s2 + $0xa8] sm:$0xff] %vm55, %v1221
  %1266 = vst.msk [vmem:[%s2 + $0xb0] sm:$0xff] %vm55, %v1222
  %1267 = vst.msk [vmem:[%s2 + $0xb8] sm:$0xff] %vm55, %v1223
  %1268 = vst.msk [vmem:[%s2 + $0xc0] sm:$0xff] %vm55, %v1224
  %1269 = vst.msk [vmem:[%s2 + $0xc8] sm:$0xff] %vm55, %v1225
  %1270 = vst.msk [vmem:[%s2 + $0xd0] sm:$0xff] %vm55, %v1226
  %1271 = vst.msk [vmem:[%s2 + $0xd8] sm:$0xff] %vm55, %v1227
  %1272 = vst.msk [vmem:[%s2 + $0xe0] sm:$0xff] %vm55, %v1228
  %1273 = vst.msk [vmem:[%s2 + $0xe8] sm:$0xff] %vm55, %v1229
  %1274 = vst.msk [vmem:[%s2 + $0xf0] sm:$0xff] %vm55, %v1230
  %1275 = vst.msk [vmem:[%s2 + $0xf8] sm:$0xff] %vm55, %v1231
  %1276 = vst.msk [vmem:[%s2 + $0x100] sm:$0xff] %vm55, %v1232
  %1277 = vst.msk [vmem:[%s2 + $0x108] sm:$0xff] %vm55, %v1233
  %1278 = vst.msk [vmem:[%s2 + $0x110] sm:$0xff] %vm55, %v1234
  %1279 = vst.msk [vmem:[%s2 + $0x118] sm:$0xff] %vm55, %v1235
  %1280 = vst.msk [vmem:[%s2 + $0x120] sm:$0xff] %vm55, %v1236
  %1281 = vst.msk [vmem:[%s2 + $0x128] sm:$0xff] %vm55, %v1237
  %1282 = vst.msk [vmem:[%s2 + $0x130] sm:$0xff] %vm55, %v1238
  %1283 = vst.msk [vmem:[%s2 + $0x138] sm:$0xff] %vm55, %v1239
  %1284 = vst.msk [vmem:[%s2 + $0x140] sm:$0xff] %vm55, %v1240
  %1285 = vst.msk [vmem:[%s2 + $0x148] sm:$0xff] %vm55, %v1241
  %1286 = vst.msk [vmem:[%s2 + $0x150] sm:$0xff] %vm55, %v1242
  %1287 = vst.msk [vmem:[%s2 + $0x158] sm:$0xff] %vm55, %v1243
  // Predicated region
  $region10: #{batchnorm_relu.1} parent=0 // pred_check
    _
  $region11: #{batchnorm_relu.1} parent=0 // pred_check_branch
    %1289 = sbr.rel (0) target = $region13
  $region12: #{batchnorm_relu.1} parent=0 // pred_region
    _
  $region13: #{batchnorm_relu.1} parent=0 // pred_fallthru
    _
  // Predicated region
  $region14: #{batchnorm_relu.1} parent=0 // pred_check
    _
  $region15: #{batchnorm_relu.1} parent=0 // pred_check_branch
    %1291 = sbr.rel (0) target = $region17
  $region16: #{batchnorm_relu.1} parent=0 // pred_region
    _
  $region17: #{batchnorm_relu.1} parent=0 // pred_fallthru
    _

</llo_original>
